<compile_context>
chip_gen: v6e
topology: v6e:2x2x1
jax: 0.10.0
libtpu: 0.0.40
codegen_flags: <defaults>
</compile_context>

<pallas_src>
import functools

import jax
import jax.numpy as jnp
from jax.experimental import pallas as pl
from jax.experimental.pallas import tpu as pltpu


def _pick_batch_block(N, L_out, target_lanes=512):
    """Largest divisor NB of N with NB*L_out <= target_lanes (fills MXU lanes, bounds VMEM)."""
    nb = 1
    for cand in range(1, N + 1):
        if N % cand == 0 and cand * L_out <= target_lanes:
            nb = cand
    return nb


def _conv_pbc_kernel(x_ref, w_ref, b_ref, o_ref, *, K, stride, L_out, Lq, NB, Wc, C_out):
    # x_ref: (1, C_in, stride, NB*Lq)  de-interleaved, PBC-wrapped input for NB batch elems
    # w_ref: (K, C_out, C_in)          per-tap weights
    # b_ref: (C_out, 1)                bias (f32)
    # o_ref: (NB, C_out, L_out)        output block (NCL layout, spatial on lanes)
    #
    # Accumulator is lane-dense: (C_out, Wc) with Wc = NB*Lq - q_max columns.  Column
    # j = n*Lq + t holds output (batch n, position t) for t < L_out; the few columns with
    # t >= L_out are harmless cross-block garbage that is never stored.
    acc = jnp.broadcast_to(b_ref[...], (C_out, Wc)).astype(jnp.float32)  # bias-init, hoisted
    for k in range(K):                               # K is small & static: unrolled tap loop
        r = k % stride
        q = k // stride
        xs = x_ref[0, :, r, q:q + Wc]                # (C_in, Wc) contiguous lane slice
        acc = acc + jnp.dot(w_ref[k], xs, preferred_element_type=jnp.float32)
    for n in range(NB):                              # static: store valid L_out columns per elem
        o_ref[n] = acc[:, n * Lq:n * Lq + L_out].astype(o_ref.dtype)


def conv_pbc_1d(x, weight, bias, *, L, filter_size, stride, batch_block=None):
    """x: (N, C_in, L); weight: (C_out, C_in, K); bias: (C_out,). Returns (N, C_out, L_out)."""
    N, C_in, L_in = x.shape
    assert L_in == L
    C_out, C_in_w, K = weight.shape
    assert C_in_w == C_in and K == filter_size
    assert stride >= 1 and K >= stride
    del_x = K - stride
    L_pad = L + del_x
    L_out = (L_pad - K) // stride + 1
    Lq = -(-L_pad // stride)                 # ceil(L_pad / stride)
    q_max = (K - 1) // stride
    out_dtype = x.dtype

    # --- glue: PBC wrap via slice+concat (identical to tensordot with the eye/wrap matrix) ---
    x_pbc = jnp.concatenate([x, x[..., :del_x]], axis=-1) if del_x > 0 else x   # (N,C_in,L_pad)

    # pad spatial to a multiple of stride so we can de-interleave
    pad = Lq * stride - L_pad
    if pad:
        x_pbc = jnp.pad(x_pbc, ((0, 0), (0, 0), (0, pad)))

    if batch_block is None:
        batch_block = _pick_batch_block(N, L_out)
    NB = batch_block
    assert N % NB == 0
    Nouter = N // NB
    lanes = NB * Lq
    Wc = lanes - q_max

    # --- glue: (N, C_in, L) -> (Nouter, C_in, stride, NB*Lq) ---
    # channels on sublanes, (batch-block, de-interleaved spatial) merged on lanes:
    # dense HBM->VMEM DMA and dense MXU lane dimension; every tap is a contiguous lane slice.
    x_d = x_pbc.reshape(Nouter, NB, C_in, Lq, stride)
    x_m = jnp.transpose(x_d, (0, 2, 4, 1, 3)).reshape(Nouter, C_in, stride, lanes)

    w_k = jnp.transpose(weight, (2, 0, 1)).astype(x.dtype)        # (K, C_out, C_in)
    b2 = bias.reshape(C_out, 1).astype(jnp.float32)

    kernel = functools.partial(_conv_pbc_kernel, K=K, stride=stride, L_out=L_out,
                               Lq=Lq, NB=NB, Wc=Wc, C_out=C_out)

    # NOTE: for large problem sizes on v7x (64 MiB VMEM), shrink batch_block / add an L_out
    # grid axis and set pltpu.CompilerParams(vmem_limit_bytes=...) accordingly.
    out = pl.pallas_call(
        kernel,
        out_shape=jax.ShapeDtypeStruct((N, C_out, L_out), out_dtype),
        grid_spec=pltpu.PrefetchScalarGridSpec(
            num_scalar_prefetch=0,
            grid=(Nouter,),
            in_specs=[
                pl.BlockSpec((1, C_in, stride, lanes), lambda i: (i, 0, 0, 0)),
                pl.BlockSpec((K, C_out, C_in), lambda i: (0, 0, 0)),
                pl.BlockSpec((C_out, 1), lambda i: (0, 0)),
            ],
            out_specs=pl.BlockSpec((NB, C_out, L_out), lambda i: (i, 0, 0)),
        ),
        compiler_params=pltpu.CompilerParams(dimension_semantics=("parallel",)),
    )(x_m, w_k, b2)
    return out


# ------------------------- pure-JAX reference (mirrors PyTorch) -------------------------

def get_pbc_tensor_1d(L, filter_size, stride, dtype=jnp.float32):
    """Same construction as getPbcTensor_1d: eye(L, L+del_x) with wrap-around ones."""
    del_x = filter_size - stride
    t = jnp.eye(L, L + del_x, dtype=dtype)
    for i in range(del_x):
        t = t.at[i, i + L].set(1.0)
    return t


def _reference(x, weight, bias, *, L, filter_size, stride):
    T = get_pbc_tensor_1d(L, filter_size, stride, x.dtype)
    xp = jnp.tensordot(x, T, axes=1)
    out = jax.lax.conv_general_dilated(
        xp, weight, window_strides=(stride,), padding="VALID",
        dimension_numbers=("NCH", "OIH", "NCH"))
    return out + bias[None, :, None]


if __name__ == "__main__":
    # Small shapes consistent with the module: batch=2, in_channel=4, out_channel=8,
    # L=16, filter_size=4, stride=2  ->  L_out = 8
    N, C_in, C_out, L, K, STRIDE = 2, 4, 8, 16, 4, 2

    key = jax.random.PRNGKey(0)
    kx, kw, kb = jax.random.split(key, 3)
    x = jax.random.normal(kx, (N, C_in, L), dtype=jnp.float32)
    # Deterministic synthetic parameters (nn.Conv1d weight: (C_out, C_in, K), bias: (C_out,))
    weight = 0.1 * jax.random.normal(kw, (C_out, C_in, K), dtype=jnp.float32)
    bias = 0.1 * jax.random.normal(kb, (C_out,), dtype=jnp.float32)

    out = conv_pbc_1d(x, weight, bias, L=L, filter_size=K, stride=STRIDE)
    out = jax.block_until_ready(out)

    ref = _reference(x, weight, bias, L=L, filter_size=K, stride=STRIDE)
    assert out.shape == (N, C_out, (L - STRIDE) // STRIDE + 1)
    assert jnp.allclose(out, ref, atol=1e-5, rtol=1e-5), "mismatch vs reference"

    print("KERNEL_OK")
</pallas_src>

<mosaic_0001>
module attributes {stable_mosaic.version = 11 : i64} {
  func.func @_conv_pbc_kernel(%arg0: i32, %arg1: memref<1x4x2x18xf32, #tpu.memory_space<vmem>>, %arg2: memref<4x8x4xf32, #tpu.memory_space<vmem>>, %arg3: memref<8x1xf32, #tpu.memory_space<vmem>>, %arg4: memref<2x8x8xf32, #tpu.memory_space<vmem>>) attributes {dimension_semantics = [#tpu.dimension_semantics<parallel>], iteration_bounds = array<i64: 1>, scalar_prefetch = 0 : i64, scratch_operands = 0 : i64, tpu.core_type = #tpu.core_type<tc>, window_params = [{transform_indices = @transform_0, window_bounds = array<i64: 1, 4, 2, 18>}, {pipeline_mode = #tpu.pipeline_mode<synchronous>, transform_indices = @transform_1, window_bounds = array<i64: 4, 8, 4>}, {pipeline_mode = #tpu.pipeline_mode<synchronous>, transform_indices = @transform_2, window_bounds = array<i64: 8, 1>}, {transform_indices = @transform_3, window_bounds = array<i64: 2, 8, 8>}]} {
    %c0 = arith.constant 0 : index
    %c0_0 = arith.constant 0 : index
    %0 = vector.load %arg3[%c0, %c0_0] : memref<8x1xf32, #tpu.memory_space<vmem>>, vector<8x1xf32>
    %1 = vector.shape_cast %0 : vector<8x1xf32> to vector<8x1xf32>
    %2 = vector.broadcast %1 : vector<8x1xf32> to vector<8x17xf32>
    %c0_1 = arith.constant 0 : index
    %c0_2 = arith.constant 0 : index
    %c0_3 = arith.constant 0 : index
    %c0_4 = arith.constant 0 : index
    %3 = vector.load %arg1[%c0_1, %c0_2, %c0_3, %c0_4] : memref<1x4x2x18xf32, #tpu.memory_space<vmem>>, vector<1x4x1x17xf32>
    %4 = vector.shape_cast %3 : vector<1x4x1x17xf32> to vector<4x17xf32>
    %c0_5 = arith.constant 0 : index
    %c0_6 = arith.constant 0 : index
    %c0_7 = arith.constant 0 : index
    %5 = vector.load %arg2[%c0_5, %c0_6, %c0_7] : memref<4x8x4xf32, #tpu.memory_space<vmem>>, vector<1x8x4xf32>
    %6 = vector.shape_cast %5 : vector<1x8x4xf32> to vector<8x4xf32>
    %cst = arith.constant dense<0.000000e+00> : vector<8x17xf32>
    %7 = tpu.matmul %6, %4, %cst {dimension_numbers = #tpu.dot_dimension_numbers<[1], [0], [0], [1], [0, 0, 1, 1], [], []>} : vector<8x4xf32>, vector<4x17xf32>, vector<8x17xf32> -> vector<8x17xf32>
    %8 = arith.addf %2, %7 : vector<8x17xf32>
    %c0_8 = arith.constant 0 : index
    %c0_9 = arith.constant 0 : index
    %c1 = arith.constant 1 : index
    %c0_10 = arith.constant 0 : index
    %9 = vector.load %arg1[%c0_8, %c0_9, %c1, %c0_10] : memref<1x4x2x18xf32, #tpu.memory_space<vmem>>, vector<1x4x1x17xf32>
    %10 = vector.shape_cast %9 : vector<1x4x1x17xf32> to vector<4x17xf32>
    %c1_11 = arith.constant 1 : index
    %c0_12 = arith.constant 0 : index
    %c0_13 = arith.constant 0 : index
    %11 = vector.load %arg2[%c1_11, %c0_12, %c0_13] : memref<4x8x4xf32, #tpu.memory_space<vmem>>, vector<1x8x4xf32>
    %12 = vector.shape_cast %11 : vector<1x8x4xf32> to vector<8x4xf32>
    %cst_14 = arith.constant dense<0.000000e+00> : vector<8x17xf32>
    %13 = tpu.matmul %12, %10, %cst_14 {dimension_numbers = #tpu.dot_dimension_numbers<[1], [0], [0], [1], [0, 0, 1, 1], [], []>} : vector<8x4xf32>, vector<4x17xf32>, vector<8x17xf32> -> vector<8x17xf32>
    %14 = arith.addf %8, %13 : vector<8x17xf32>
    %c0_15 = arith.constant 0 : index
    %c0_16 = arith.constant 0 : index
    %c0_17 = arith.constant 0 : index
    %c1_18 = arith.constant 1 : index
    %15 = vector.load %arg1[%c0_15, %c0_16, %c0_17, %c1_18] : memref<1x4x2x18xf32, #tpu.memory_space<vmem>>, vector<1x4x1x17xf32>
    %16 = vector.shape_cast %15 : vector<1x4x1x17xf32> to vector<4x17xf32>
    %c2 = arith.constant 2 : index
    %c0_19 = arith.constant 0 : index
    %c0_20 = arith.constant 0 : index
    %17 = vector.load %arg2[%c2, %c0_19, %c0_20] : memref<4x8x4xf32, #tpu.memory_space<vmem>>, vector<1x8x4xf32>
    %18 = vector.shape_cast %17 : vector<1x8x4xf32> to vector<8x4xf32>
    %cst_21 = arith.constant dense<0.000000e+00> : vector<8x17xf32>
    %19 = tpu.matmul %18, %16, %cst_21 {dimension_numbers = #tpu.dot_dimension_numbers<[1], [0], [0], [1], [0, 0, 1, 1], [], []>} : vector<8x4xf32>, vector<4x17xf32>, vector<8x17xf32> -> vector<8x17xf32>
    %20 = arith.addf %14, %19 : vector<8x17xf32>
    %c0_22 = arith.constant 0 : index
    %c0_23 = arith.constant 0 : index
    %c1_24 = arith.constant 1 : index
    %c1_25 = arith.constant 1 : index
    %21 = vector.load %arg1[%c0_22, %c0_23, %c1_24, %c1_25] : memref<1x4x2x18xf32, #tpu.memory_space<vmem>>, vector<1x4x1x17xf32>
    %22 = vector.shape_cast %21 : vector<1x4x1x17xf32> to vector<4x17xf32>
    %c3 = arith.constant 3 : index
    %c0_26 = arith.constant 0 : index
    %c0_27 = arith.constant 0 : index
    %23 = vector.load %arg2[%c3, %c0_26, %c0_27] : memref<4x8x4xf32, #tpu.memory_space<vmem>>, vector<1x8x4xf32>
    %24 = vector.shape_cast %23 : vector<1x8x4xf32> to vector<8x4xf32>
    %cst_28 = arith.constant dense<0.000000e+00> : vector<8x17xf32>
    %25 = tpu.matmul %24, %22, %cst_28 {dimension_numbers = #tpu.dot_dimension_numbers<[1], [0], [0], [1], [0, 0, 1, 1], [], []>} : vector<8x4xf32>, vector<4x17xf32>, vector<8x17xf32> -> vector<8x17xf32>
    %26 = arith.addf %20, %25 : vector<8x17xf32>
    %27 = vector.extract_strided_slice %26 {offsets = [0, 0], sizes = [8, 8], strides = [1, 1]} : vector<8x17xf32> to vector<8x8xf32>
    %c0_29 = arith.constant 0 : index
    %c0_30 = arith.constant 0 : index
    %c0_31 = arith.constant 0 : index
    %28 = vector.load %arg4[%c0_29, %c0_30, %c0_31] : memref<2x8x8xf32, #tpu.memory_space<vmem>>, vector<1x8x8xf32>
    %29 = vector.shape_cast %28 : vector<1x8x8xf32> to vector<8x8xf32>
    %30 = vector.shape_cast %27 : vector<8x8xf32> to vector<1x8x8xf32>
    tpu.vector_store %arg4[%c0_29, %c0_30, %c0_31], %30 {strides = array<i32>} : memref<2x8x8xf32, #tpu.memory_space<vmem>>, vector<1x8x8xf32>,
    %31 = vector.extract_strided_slice %26 {offsets = [0, 9], sizes = [8, 8], strides = [1, 1]} : vector<8x17xf32> to vector<8x8xf32>
    %c1_32 = arith.constant 1 : index
    %c0_33 = arith.constant 0 : index
    %c0_34 = arith.constant 0 : index
    %32 = vector.load %arg4[%c1_32, %c0_33, %c0_34] : memref<2x8x8xf32, #tpu.memory_space<vmem>>, vector<1x8x8xf32>
    %33 = vector.shape_cast %32 : vector<1x8x8xf32> to vector<8x8xf32>
    %34 = vector.shape_cast %31 : vector<8x8xf32> to vector<1x8x8xf32>
    tpu.vector_store %arg4[%c1_32, %c0_33, %c0_34], %34 {strides = array<i32>} : memref<2x8x8xf32, #tpu.memory_space<vmem>>, vector<1x8x8xf32>,
    return
  }
  func.func @transform_0(%arg0: i32) -> (i32, i32, i32, i32) {
    %c0_i32 = arith.constant 0 : i32
    %c0_i32_0 = arith.constant 0 : i32
    %c0_i32_1 = arith.constant 0 : i32
    %c0_i32_2 = arith.constant 0 : i32
    return %arg0, %c0_i32, %c0_i32_0, %c0_i32_1 : i32, i32, i32, i32
  }
  func.func @transform_1(%arg0: i32) -> (i32, i32, i32) {
    %c0_i32 = arith.constant 0 : i32
    %c0_i32_0 = arith.constant 0 : i32
    %c0_i32_1 = arith.constant 0 : i32
    %c0_i32_2 = arith.constant 0 : i32
    return %c0_i32, %c0_i32_0, %c0_i32_1 : i32, i32, i32
  }
  func.func @transform_2(%arg0: i32) -> (i32, i32) {
    %c0_i32 = arith.constant 0 : i32
    %c0_i32_0 = arith.constant 0 : i32
    %c0_i32_1 = arith.constant 0 : i32
    return %c0_i32, %c0_i32_0 : i32, i32
  }
  func.func @transform_3(%arg0: i32) -> (i32, i32, i32) {
    %c0_i32 = arith.constant 0 : i32
    %c0_i32_0 = arith.constant 0 : i32
    %c0_i32_1 = arith.constant 0 : i32
    return %arg0, %c0_i32, %c0_i32_0 : i32, i32, i32
  }
}

</mosaic_0001>

<llo_original>
// kernel: tpu_custom_call.1
$region0: #{tpu_custom_call.1}
  #allocation0 [shape = 'u32[]', space=smem, size = 0x4, offset = 0x4, fixed_abs, tag = 'smem constant byte address 0x4 - core index']
  #allocation1 [shape = 'u32[144,128]{1,0:T(1,128)}', space=vmem, size = 0x12000, scoped, tag = 'internal scratch']
  %s0 = inlined_call_operand.vmem [shape: f32[1,4,2,18], index: 0, kind: input, shape index: {}]
  %s1 = inlined_call_operand.vmem [shape: f32[4,8,4], index: 1, kind: input, shape index: {}]
  %s2 = inlined_call_operand.vmem [shape: f32[8,1], index: 2, kind: input, shape index: {}]
  %s3 = inlined_call_operand.hbm [shape: f32[2,8,8], index: 3, kind: output, shape index: {}]
  %s4 = sld [smem:[#allocation0]]
  $region22: #{tpu_custom_call.1} parent=0
    _
  %s6 = ssub.s32 1, %s4
  %s7 = scalar_select 0, %s6, %s4
  $region1: #{tpu_custom_call.1} parent=0
    #allocation2 [shape = 'u8[8192]{0}', space=vmem, size = 0x2000, scoped, tag = 'output window, operand 0, single buffered']
    #allocation3 [shape = 's32[1]{0}', space=sflag, size = 0x4, scoped, tag = 'scoped memory for tpu_custom_call.1']
    %8 = vsyncpa [#allocation3], 0
    // Predicated region
    $region2: #{tpu_custom_call.1} parent=1 // pred_check
      _
    $region3: #{tpu_custom_call.1} parent=1 // pred_check_branch
      %10 = sbr.rel (0) target = $region5
    $region4: #{tpu_custom_call.1} parent=1 // pred_region
      _
    $region5: #{tpu_custom_call.1} parent=1 // pred_fallthru
      _
    // Predicated region
    $region6: #{tpu_custom_call.1} parent=1 // pred_check
      _
    $region7: #{tpu_custom_call.1} parent=1 // pred_check_branch
      %12 = sbr.rel (0) target = $region9
    $region8: #{tpu_custom_call.1} parent=1 // pred_region
      _
    $region9: #{tpu_custom_call.1} parent=1 // pred_fallthru
      _
    // Predicated region
    $region10: #{tpu_custom_call.1} parent=1 // pred_check
      _
    $region11: #{tpu_custom_call.1} parent=1 // pred_check_branch
      %14 = sbr.rel (0) target = $region13
    $region12: #{tpu_custom_call.1} parent=1 // pred_region
      _
    $region13: #{tpu_custom_call.1} parent=1 // pred_fallthru
      _
    %v15 = vld [vmem:[%s2] sm:$0xff]
    %17 = vset.pattern.permute.xlu0 0
    %18 = vperm.xlu0 %17, %v15
    %v19 = vpop.permute.xlu0 %18
    %v21 = vld [vmem:[%s0] sm:$0x1]
    %v22 = vld [vmem:[%s0 + $0x2] sm:$0x1]
    %v23 = vld [vmem:[%s0 + $0x4] sm:$0x1]
    %v24 = vld [vmem:[%s0 + $0x6] sm:$0x1]
    %v25 = vld [vmem:[%s1] sm:$0xff]
    %v30 = vrot.slane %v22, 7
    %vm31 = vcmask 1041409
    %v32 = vsel %vm31, %v30, %v21
    %v33 = vrot.slane %v23, 6
    %vm34 = vcmask 1042434
    %v35 = vsel %vm34, %v33, %v32
    %v36 = vrot.slane %v24, 5
    %vm37 = vcmask 1043459
    %v38 = vsel %vm37, %v36, %v35
    %vm39 = vcmask 31744
    %v41 = vsel %vm39, %v25, 0
    %vm43 = vcmask 1043456
    %v44 = vsel %vm43, %v38, 0
    %46 = vmatprep.subr.mxu0 0.0
    %47 = vmatpush1.msra.mxu0 0.0
    %48 = vmatprep.subr.mxu0 0.0
    %49 = vmatpush1.msra.mxu0 0.0
    %50 = vmatprep.subr.mxu0 0.0
    %51 = vmatpush1.msra.mxu0 0.0
    %52 = vmatprep.subr.mxu0 0.0
    %53 = vmatpush1.msra.mxu0 0.0
    %54 = vmatprep.subr.mxu0 0.0
    %55 = vmatpush1.msra.mxu0 0.0
    %56 = vmatprep.subr.mxu0 0.0
    %57 = vmatpush1.msra.mxu0 0.0
    %58 = vmatprep.subr.mxu0 0.0
    %59 = vmatpush1.msra.mxu0 0.0
    %60 = vmatprep.subr.mxu0 0.0
    %61 = vmatpush1.msra.mxu0 0.0
    %62 = vmatprep.subr.mxu0 0.0
    %63 = vmatpush1.msra.mxu0 0.0
    %64 = vmatprep.subr.mxu0 0.0
    %65 = vmatpush1.msra.mxu0 0.0
    %66 = vmatprep.subr.mxu0 0.0
    %67 = vmatpush1.msra.mxu0 0.0
    %68 = vmatprep.subr.mxu0 0.0
    %69 = vmatpush1.msra.mxu0 0.0
    %70 = vmatprep.subr.mxu0 0.0
    %71 = vmatpush1.msra.mxu0 0.0
    %72 = vmatprep.subr.mxu0 0.0
    %73 = vmatpush1.msra.mxu0 0.0
    %74 = vmatprep.subr.mxu0 0.0
    %75 = vmatpush1.msra.mxu0 0.0
    %76 = vmatprep.subr.mxu0 0.0
    %77 = vmatpush1.msra.mxu0 %v44
    %78 = vmatprep.subr.mxu0 0.0
    %79 = vmatpush2.msra.mxu0 0.0
    %80 = vmatprep.subr.mxu0 0.0
    %81 = vmatpush2.msra.mxu0 0.0
    %82 = vmatprep.subr.mxu0 0.0
    %83 = vmatpush2.msra.mxu0 0.0
    %84 = vmatprep.subr.mxu0 0.0
    %85 = vmatpush2.msra.mxu0 0.0
    %86 = vmatprep.subr.mxu0 0.0
    %87 = vmatpush2.msra.mxu0 0.0
    %88 = vmatprep.subr.mxu0 0.0
    %89 = vmatpush2.msra.mxu0 0.0
    %90 = vmatprep.subr.mxu0 0.0
    %91 = vmatpush2.msra.mxu0 0.0
    %92 = vmatprep.subr.mxu0 0.0
    %93 = vmatpush2.msra.mxu0 0.0
    %94 = vmatprep.subr.mxu0 0.0
    %95 = vmatpush2.msra.mxu0 0.0
    %96 = vmatprep.subr.mxu0 0.0
    %97 = vmatpush2.msra.mxu0 0.0
    %98 = vmatprep.subr.mxu0 0.0
    %99 = vmatpush2.msra.mxu0 0.0
    %100 = vmatprep.subr.mxu0 0.0
    %101 = vmatpush2.msra.mxu0 0.0
    %102 = vmatprep.subr.mxu0 0.0
    %103 = vmatpush2.msra.mxu0 0.0
    %104 = vmatprep.subr.mxu0 0.0
    %105 = vmatpush2.msra.mxu0 0.0
    %106 = vmatprep.subr.mxu0 0.0
    %107 = vmatpush2.msra.mxu0 0.0
    %108 = vmatprep.subr.mxu0 0.0
    %109 = vmatpush2.msra.mxu0 0.0
    %110 = vmatprep.mubr.f32.mxu0 0.0
    %111 = vmatmul.mubr.f32.gmra.mxu0 %v41
    %v112 = vpop.f32.mrf.mxu0
    %v113 = vadd.f32 0.0, %v112
    %v114 = vpop.f32.mrf.mxu0
    %115 = vdwg.mxu0
    %v116 = vadd.f32 %v19, %v113
    %v117 = vld [vmem:[%s0 + $0x1] sm:$0x1]
    %v118 = vld [vmem:[%s0 + $0x3] sm:$0x1]
    %v119 = vld [vmem:[%s0 + $0x5] sm:$0x1]
    %v120 = vld [vmem:[%s0 + $0x7] sm:$0x1]
    %s121 = scalar_lea.vmem %s1, 8
    %v122 = vld [vmem:[%s121] sm:$0xff]
    %v127 = vrot.slane %v118, 7
    %v128 = vsel %vm31, %v127, %v117
    %v129 = vrot.slane %v119, 6
    %v130 = vsel %vm34, %v129, %v128
    %v131 = vrot.slane %v120, 5
    %v132 = vsel %vm37, %v131, %v130
    %v134 = vsel %vm39, %v122, 0
    %v136 = vsel %vm43, %v132, 0
    %138 = vmatprep.subr.mxu0 0.0
    %139 = vmatpush1.msra.mxu0 0.0
    %140 = vmatprep.subr.mxu0 0.0
    %141 = vmatpush1.msra.mxu0 0.0
    %142 = vmatprep.subr.mxu0 0.0
    %143 = vmatpush1.msra.mxu0 0.0
    %144 = vmatprep.subr.mxu0 0.0
    %145 = vmatpush1.msra.mxu0 0.0
    %146 = vmatprep.subr.mxu0 0.0
    %147 = vmatpush1.msra.mxu0 0.0
    %148 = vmatprep.subr.mxu0 0.0
    %149 = vmatpush1.msra.mxu0 0.0
    %150 = vmatprep.subr.mxu0 0.0
    %151 = vmatpush1.msra.mxu0 0.0
    %152 = vmatprep.subr.mxu0 0.0
    %153 = vmatpush1.msra.mxu0 0.0
    %154 = vmatprep.subr.mxu0 0.0
    %155 = vmatpush1.msra.mxu0 0.0
    %156 = vmatprep.subr.mxu0 0.0
    %157 = vmatpush1.msra.mxu0 0.0
    %158 = vmatprep.subr.mxu0 0.0
    %159 = vmatpush1.msra.mxu0 0.0
    %160 = vmatprep.subr.mxu0 0.0
    %161 = vmatpush1.msra.mxu0 0.0
    %162 = vmatprep.subr.mxu0 0.0
    %163 = vmatpush1.msra.mxu0 0.0
    %164 = vmatprep.subr.mxu0 0.0
    %165 = vmatpush1.msra.mxu0 0.0
    %166 = vmatprep.subr.mxu0 0.0
    %167 = vmatpush1.msra.mxu0 0.0
    %168 = vmatprep.subr.mxu0 0.0
    %169 = vmatpush1.msra.mxu0 %v136
    %170 = vmatprep.subr.mxu0 0.0
    %171 = vmatpush2.msra.mxu0 0.0
    %172 = vmatprep.subr.mxu0 0.0
    %173 = vmatpush2.msra.mxu0 0.0
    %174 = vmatprep.subr.mxu0 0.0
    %175 = vmatpush2.msra.mxu0 0.0
    %176 = vmatprep.subr.mxu0 0.0
    %177 = vmatpush2.msra.mxu0 0.0
    %178 = vmatprep.subr.mxu0 0.0
    %179 = vmatpush2.msra.mxu0 0.0
    %180 = vmatprep.subr.mxu0 0.0
    %181 = vmatpush2.msra.mxu0 0.0
    %182 = vmatprep.subr.mxu0 0.0
    %183 = vmatpush2.msra.mxu0 0.0
    %184 = vmatprep.subr.mxu0 0.0
    %185 = vmatpush2.msra.mxu0 0.0
    %186 = vmatprep.subr.mxu0 0.0
    %187 = vmatpush2.msra.mxu0 0.0
    %188 = vmatprep.subr.mxu0 0.0
    %189 = vmatpush2.msra.mxu0 0.0
    %190 = vmatprep.subr.mxu0 0.0
    %191 = vmatpush2.msra.mxu0 0.0
    %192 = vmatprep.subr.mxu0 0.0
    %193 = vmatpush2.msra.mxu0 0.0
    %194 = vmatprep.subr.mxu0 0.0
    %195 = vmatpush2.msra.mxu0 0.0
    %196 = vmatprep.subr.mxu0 0.0
    %197 = vmatpush2.msra.mxu0 0.0
    %198 = vmatprep.subr.mxu0 0.0
    %199 = vmatpush2.msra.mxu0 0.0
    %200 = vmatprep.subr.mxu0 0.0
    %201 = vmatpush2.msra.mxu0 0.0
    %202 = vmatprep.mubr.f32.mxu0 0.0
    %203 = vmatmul.mubr.f32.gmra.mxu0 %v134
    %v204 = vpop.f32.mrf.mxu0
    %v205 = vadd.f32 0.0, %v204
    %v206 = vpop.f32.mrf.mxu0
    %207 = vdwg.mxu0
    %v208 = vadd.f32 %v116, %v205
    %s209 = scalar_lea.vmem %s1, 16
    %v210 = vld [vmem:[%s209] sm:$0xff]
    %211 = vrot.lane.b32.xlu0 %v38, 127
    %v212 = vpop.permute.xlu0 %211
    %v214 = vsel %vm39, %v210, 0
    %v216 = vsel %vm43, %v212, 0
    %218 = vmatprep.subr.mxu0 0.0
    %219 = vmatpush1.msra.mxu0 0.0
    %220 = vmatprep.subr.mxu0 0.0
    %221 = vmatpush1.msra.mxu0 0.0
    %222 = vmatprep.subr.mxu0 0.0
    %223 = vmatpush1.msra.mxu0 0.0
    %224 = vmatprep.subr.mxu0 0.0
    %225 = vmatpush1.msra.mxu0 0.0
    %226 = vmatprep.subr.mxu0 0.0
    %227 = vmatpush1.msra.mxu0 0.0
    %228 = vmatprep.subr.mxu0 0.0
    %229 = vmatpush1.msra.mxu0 0.0
    %230 = vmatprep.subr.mxu0 0.0
    %231 = vmatpush1.msra.mxu0 0.0
    %232 = vmatprep.subr.mxu0 0.0
    %233 = vmatpush1.msra.mxu0 0.0
    %234 = vmatprep.subr.mxu0 0.0
    %235 = vmatpush1.msra.mxu0 0.0
    %236 = vmatprep.subr.mxu0 0.0
    %237 = vmatpush1.msra.mxu0 0.0
    %238 = vmatprep.subr.mxu0 0.0
    %239 = vmatpush1.msra.mxu0 0.0
    %240 = vmatprep.subr.mxu0 0.0
    %241 = vmatpush1.msra.mxu0 0.0
    %242 = vmatprep.subr.mxu0 0.0
    %243 = vmatpush1.msra.mxu0 0.0
    %244 = vmatprep.subr.mxu0 0.0
    %245 = vmatpush1.msra.mxu0 0.0
    %246 = vmatprep.subr.mxu0 0.0
    %247 = vmatpush1.msra.mxu0 0.0
    %248 = vmatprep.subr.mxu0 0.0
    %249 = vmatpush1.msra.mxu0 %v216
    %250 = vmatprep.subr.mxu0 0.0
    %251 = vmatpush2.msra.mxu0 0.0
    %252 = vmatprep.subr.mxu0 0.0
    %253 = vmatpush2.msra.mxu0 0.0
    %254 = vmatprep.subr.mxu0 0.0
    %255 = vmatpush2.msra.mxu0 0.0
    %256 = vmatprep.subr.mxu0 0.0
    %257 = vmatpush2.msra.mxu0 0.0
    %258 = vmatprep.subr.mxu0 0.0
    %259 = vmatpush2.msra.mxu0 0.0
    %260 = vmatprep.subr.mxu0 0.0
    %261 = vmatpush2.msra.mxu0 0.0
    %262 = vmatprep.subr.mxu0 0.0
    %263 = vmatpush2.msra.mxu0 0.0
    %264 = vmatprep.subr.mxu0 0.0
    %265 = vmatpush2.msra.mxu0 0.0
    %266 = vmatprep.subr.mxu0 0.0
    %267 = vmatpush2.msra.mxu0 0.0
    %268 = vmatprep.subr.mxu0 0.0
    %269 = vmatpush2.msra.mxu0 0.0
    %270 = vmatprep.subr.mxu0 0.0
    %271 = vmatpush2.msra.mxu0 0.0
    %272 = vmatprep.subr.mxu0 0.0
    %273 = vmatpush2.msra.mxu0 0.0
    %274 = vmatprep.subr.mxu0 0.0
    %275 = vmatpush2.msra.mxu0 0.0
    %276 = vmatprep.subr.mxu0 0.0
    %277 = vmatpush2.msra.mxu0 0.0
    %278 = vmatprep.subr.mxu0 0.0
    %279 = vmatpush2.msra.mxu0 0.0
    %280 = vmatprep.subr.mxu0 0.0
    %281 = vmatpush2.msra.mxu0 0.0
    %282 = vmatprep.mubr.f32.mxu0 0.0
    %283 = vmatmul.mubr.f32.gmra.mxu0 %v214
    %v284 = vpop.f32.mrf.mxu0
    %v285 = vadd.f32 0.0, %v284
    %v286 = vpop.f32.mrf.mxu0
    %287 = vdwg.mxu0
    %v288 = vadd.f32 %v208, %v285
    %s289 = scalar_lea.vmem %s1, 24
    %v290 = vld [vmem:[%s289] sm:$0xff]
    %291 = vrot.lane.b32.xlu0 %v132, 127
    %v292 = vpop.permute.xlu0 %291
    %v294 = vsel %vm39, %v290, 0
    %v296 = vsel %vm43, %v292, 0
    %298 = vmatprep.subr.mxu0 0.0
    %299 = vmatpush1.msra.mxu0 0.0
    %300 = vmatprep.subr.mxu0 0.0
    %301 = vmatpush1.msra.mxu0 0.0
    %302 = vmatprep.subr.mxu0 0.0
    %303 = vmatpush1.msra.mxu0 0.0
    %304 = vmatprep.subr.mxu0 0.0
    %305 = vmatpush1.msra.mxu0 0.0
    %306 = vmatprep.subr.mxu0 0.0
    %307 = vmatpush1.msra.mxu0 0.0
    %308 = vmatprep.subr.mxu0 0.0
    %309 = vmatpush1.msra.mxu0 0.0
    %310 = vmatprep.subr.mxu0 0.0
    %311 = vmatpush1.msra.mxu0 0.0
    %312 = vmatprep.subr.mxu0 0.0
    %313 = vmatpush1.msra.mxu0 0.0
    %314 = vmatprep.subr.mxu0 0.0
    %315 = vmatpush1.msra.mxu0 0.0
    %316 = vmatprep.subr.mxu0 0.0
    %317 = vmatpush1.msra.mxu0 0.0
    %318 = vmatprep.subr.mxu0 0.0
    %319 = vmatpush1.msra.mxu0 0.0
    %320 = vmatprep.subr.mxu0 0.0
    %321 = vmatpush1.msra.mxu0 0.0
    %322 = vmatprep.subr.mxu0 0.0
    %323 = vmatpush1.msra.mxu0 0.0
    %324 = vmatprep.subr.mxu0 0.0
    %325 = vmatpush1.msra.mxu0 0.0
    %326 = vmatprep.subr.mxu0 0.0
    %327 = vmatpush1.msra.mxu0 0.0
    %328 = vmatprep.subr.mxu0 0.0
    %329 = vmatpush1.msra.mxu0 %v296
    %330 = vmatprep.subr.mxu0 0.0
    %331 = vmatpush2.msra.mxu0 0.0
    %332 = vmatprep.subr.mxu0 0.0
    %333 = vmatpush2.msra.mxu0 0.0
    %334 = vmatprep.subr.mxu0 0.0
    %335 = vmatpush2.msra.mxu0 0.0
    %336 = vmatprep.subr.mxu0 0.0
    %337 = vmatpush2.msra.mxu0 0.0
    %338 = vmatprep.subr.mxu0 0.0
    %339 = vmatpush2.msra.mxu0 0.0
    %340 = vmatprep.subr.mxu0 0.0
    %341 = vmatpush2.msra.mxu0 0.0
    %342 = vmatprep.subr.mxu0 0.0
    %343 = vmatpush2.msra.mxu0 0.0
    %344 = vmatprep.subr.mxu0 0.0
    %345 = vmatpush2.msra.mxu0 0.0
    %346 = vmatprep.subr.mxu0 0.0
    %347 = vmatpush2.msra.mxu0 0.0
    %348 = vmatprep.subr.mxu0 0.0
    %349 = vmatpush2.msra.mxu0 0.0
    %350 = vmatprep.subr.mxu0 0.0
    %351 = vmatpush2.msra.mxu0 0.0
    %352 = vmatprep.subr.mxu0 0.0
    %353 = vmatpush2.msra.mxu0 0.0
    %354 = vmatprep.subr.mxu0 0.0
    %355 = vmatpush2.msra.mxu0 0.0
    %356 = vmatprep.subr.mxu0 0.0
    %357 = vmatpush2.msra.mxu0 0.0
    %358 = vmatprep.subr.mxu0 0.0
    %359 = vmatpush2.msra.mxu0 0.0
    %360 = vmatprep.subr.mxu0 0.0
    %361 = vmatpush2.msra.mxu0 0.0
    %362 = vmatprep.mubr.f32.mxu0 0.0
    %363 = vmatmul.mubr.f32.gmra.mxu0 %v294
    %v364 = vpop.f32.mrf.mxu0
    %v365 = vadd.f32 0.0, %v364
    %v366 = vpop.f32.mrf.mxu0
    %367 = vdwg.mxu0
    %v368 = vadd.f32 %v288, %v365
    %vm369 = vcmask 64512
    %370 = vst.msk [vmem:[#allocation2] sm:$0xff] %vm369, %v368
    %372 = vrot.lane.b32.xlu0 %v368, 119
    %v373 = vpop.permute.xlu0 %372
    %s375 = scalar_lea.vmem [#allocation2], 8
    %376 = vst.msk [vmem:[%s375] sm:$0xff] %vm369, %v373
    // Predicated region
    $region14: #{tpu_custom_call.1} parent=1 // pred_check
      _
    $region15: #{tpu_custom_call.1} parent=1 // pred_check_branch
      %378 = sbr.rel (0) target = $region17
    $region16: #{tpu_custom_call.1} parent=1 // pred_region
      %s380 = ssub.s32 256, 256
      %381 = vsyncadd [#allocation3], %s380
      %s382 = sshll.u32 [#allocation2], 4
      %s383 = int_to_ptr.vmem [resolvable:$true] %s382
      %388 = dma.vmem_to_hbm [thread:$0]  %s383, 256, %s3, [#allocation3], 128, 128, 8
    $region17: #{tpu_custom_call.1} parent=1 // pred_fallthru
      _
    // Predicated region
    $region18: #{tpu_custom_call.1} parent=1 // pred_check
      _
    $region19: #{tpu_custom_call.1} parent=1 // pred_check_branch
      %390 = sbr.rel (0) target = $region21
    $region20: #{tpu_custom_call.1} parent=1 // pred_region
      %391 = dma.done [#allocation3], 256
    $region21: #{tpu_custom_call.1} parent=1 // pred_fallthru
      _
    %392 = vsyncpa [#allocation3], 1

</llo_original>
